<compile_context>
chip_gen: v7x
topology: tpu7x:2x2x1
jax: 0.10.0
libtpu: 0.0.40
codegen_flags: <defaults>
</compile_context>

<pallas_src>
import functools

import jax
import jax.numpy as jnp
from jax.experimental import pallas as pl
from jax.experimental.pallas import tpu as pltpu


_CHUNK_LANES = 128  # interleave chunk width: stores are (128*r)-lane dense


def _pixel_shuffle_1d_kernel(x_ref, o_ref, *, upscale_factor: int):
    # x_ref: (1, C, TW) block; o_ref: (1, C//r, TW*r) block.
    r = upscale_factor
    _, c, tw = x_ref.shape
    cl = c // r
    if r == 1:
        o_ref[...] = x_ref[...]
        return
    # Fixed-size W chunks keep the (cl, wc, r) lane-sparse intermediate small
    # and independent of TW; every chunk store is a dense (wc*r)-lane store at
    # a 128-aligned static offset.
    wc = _CHUNK_LANES if tw % _CHUNK_LANES == 0 else tw
    for i in range(tw // wc):
        w0 = i * wc
        xc = x_ref[0, :, w0:w0 + wc]            # (C, wc), lane-dense load
        xc = xc.reshape(r, cl, wc)              # regroup sublanes (free)
        xc = jnp.transpose(xc, (1, 2, 0))       # (cl, wc, r): bounded XLU relayout
        o_ref[0, :, w0 * r:(w0 + wc) * r] = xc.reshape(cl, wc * r)


def _vmem_policy():
    """(vmem_limit_bytes, tile_budget_bytes) derived from the TPU generation."""
    phys = None
    try:
        phys = getattr(pltpu.get_tpu_info(), "vmem_capacity_bytes", None)
    except Exception:
        phys = None
    if phys is None:
        phys = 64 * 1024 * 1024            # conservative (v7x-class) default
    if phys <= 64 * 1024 * 1024:
        # v7x-class: 64 MiB physical per TensorCore.
        return 44 * 1024 * 1024, 28 * 1024 * 1024
    # v5e / v6e: 128 MiB physical VMEM.
    return 96 * 1024 * 1024, 56 * 1024 * 1024


def _tile_footprint_bytes(c: int, cl: int, tw: int, itemsize: int) -> int:
    # Double-buffered input (1,C,TW) + output (1,C//r,TW*r) blocks ...
    io = 4 * c * tw * itemsize
    # ... plus the lane-sparse (cl, wc, r) relayout temporaries (r of 128 lanes
    # used -> ~cl * wc/8 full vregs), with ~2 live at a time.
    wc = _CHUNK_LANES if tw % _CHUNK_LANES == 0 else tw
    temp = 2 * cl * wc * 512
    return io + temp


def _choose_w_tile(w: int, c: int, cl: int, itemsize: int, *,
                   budget_bytes: int, max_tile: int, prefer_multi: bool) -> int:
    """Largest 128-multiple tile of W that divides W and fits the VMEM budget.

    When prefer_multi (B == 1), prefer tile counts >= 2 (ideally even) so both
    v7x TensorCores are busy."""
    if w % 128 != 0:
        # Unaligned widths: single full-extent block (always a legal BlockSpec).
        return w
    limit = min(w, max_tile)
    cands = [tw for tw in range(128, limit + 1, 128)
             if w % tw == 0
             and _tile_footprint_bytes(c, cl, tw, itemsize) <= budget_bytes]
    if not cands:
        return 128
    if prefer_multi:
        multi = [tw for tw in cands if w // tw >= 2]
        if multi:
            even = [tw for tw in multi if (w // tw) % 2 == 0]
            return max(even) if even else max(multi)
    return max(cands)


def pixel_shuffle_1d(x: jax.Array, upscale_factor: int, *,
                     max_w_tile: int = 4096) -> jax.Array:
    """x: (B, C, W) -> (B, C // upscale_factor, W * upscale_factor)."""
    b, c, w = x.shape
    r = int(upscale_factor)
    assert c % r == 0, "channels must be divisible by upscale_factor"
    if r == 1:
        return x                                   # degenerate case: no HBM pass
    cl = c // r
    wl = w * r
    itemsize = jnp.dtype(x.dtype).itemsize

    vmem_limit, budget = _vmem_policy()
    tw = _choose_w_tile(w, c, cl, itemsize, budget_bytes=budget,
                        max_tile=max_w_tile, prefer_multi=(b == 1))
    assert w % tw == 0
    grid = (b, w // tw)

    kernel = functools.partial(_pixel_shuffle_1d_kernel, upscale_factor=r)

    return pl.pallas_call(
        kernel,
        out_shape=jax.ShapeDtypeStruct((b, cl, wl), x.dtype),
        grid_spec=pltpu.PrefetchScalarGridSpec(
            num_scalar_prefetch=0,
            grid=grid,
            in_specs=[pl.BlockSpec((1, c, tw), lambda i, k: (i, 0, k))],
            out_specs=pl.BlockSpec((1, cl, tw * r), lambda i, k: (i, 0, k)),
        ),
        compiler_params=pltpu.CompilerParams(
            dimension_semantics=("parallel", "parallel"),
            vmem_limit_bytes=vmem_limit,
        ),
        cost_estimate=pl.CostEstimate(
            flops=0,
            transcendentals=0,
            bytes_accessed=2 * b * c * w * itemsize,
        ),
    )(x)


def _pixel_shuffle_1d_ref(x: jax.Array, upscale_factor: int) -> jax.Array:
    # Pure-JAX reference matching the PyTorch module exactly.
    b, c, w = x.shape
    cl = c // upscale_factor
    x = x.reshape(b, upscale_factor, cl, w)
    x = jnp.transpose(x, (0, 2, 3, 1))
    return x.reshape(b, cl, upscale_factor * w)


if __name__ == "__main__":
    key = jax.random.PRNGKey(0)

    # Test 1: small, non-128-aligned width -> full-extent fallback block.
    B, C, W, R = 2, 8, 16, 4
    x = jax.random.normal(key, (B, C, W), dtype=jnp.float32)
    out = jax.block_until_ready(pixel_shuffle_1d(x, R))
    ref = _pixel_shuffle_1d_ref(x, R)
    assert out.shape == (B, C // R, W * R), out.shape
    assert out.dtype == x.dtype
    assert jnp.array_equal(out, ref), "mismatch vs reference (test 1)"

    # Test 2: lane-aligned width, multi-chunk body (TW=256 -> two 128-lane chunks).
    x2 = jax.random.normal(jax.random.fold_in(key, 1), (2, 16, 256), jnp.float32)
    out2 = jax.block_until_ready(pixel_shuffle_1d(x2, 4))
    assert out2.shape == (2, 4, 1024), out2.shape
    assert jnp.array_equal(out2, _pixel_shuffle_1d_ref(x2, 4)), "mismatch (test 2)"

    # Test 3: batch=1 -> chooser prefers >= 2 W tiles (v7x TC balance); r=2.
    x3 = jax.random.normal(jax.random.fold_in(key, 2), (1, 12, 512), jnp.float32)
    out3 = jax.block_until_ready(pixel_shuffle_1d(x3, 2, max_w_tile=256))
    assert out3.shape == (1, 6, 1024), out3.shape
    assert jnp.array_equal(out3, _pixel_shuffle_1d_ref(x3, 2)), "mismatch (test 3)"

    # Test 4: r == 1 short-circuit (no kernel launch, identity).
    out4 = pixel_shuffle_1d(x2, 1)
    assert out4 is x2

    print("KERNEL_OK")
</pallas_src>

<mosaic_0001>
module attributes {stable_mosaic.version = 11 : i64} {
  func.func @_pixel_shuffle_1d_kernel(%arg0: i32, %arg1: i32, %arg2: memref<1x8x16xf32, #tpu.memory_space<vmem>>, %arg3: memref<1x2x64xf32, #tpu.memory_space<vmem>>) attributes {dimension_semantics = [#tpu.dimension_semantics<parallel>, #tpu.dimension_semantics<parallel>], iteration_bounds = array<i64: 2, 1>, scalar_prefetch = 0 : i64, scratch_operands = 0 : i64, tpu.core_type = #tpu.core_type<tc>, window_params = [{transform_indices = @transform_0, window_bounds = array<i64: 1, 8, 16>}, {transform_indices = @transform_1, window_bounds = array<i64: 1, 2, 64>}]} {
    %c0 = arith.constant 0 : index
    %c0_0 = arith.constant 0 : index
    %c0_1 = arith.constant 0 : index
    %0 = vector.load %arg2[%c0, %c0_0, %c0_1] : memref<1x8x16xf32, #tpu.memory_space<vmem>>, vector<1x8x16xf32>
    %1 = vector.shape_cast %0 : vector<1x8x16xf32> to vector<8x16xf32>
    %2 = vector.shape_cast %1 : vector<8x16xf32> to vector<4x2x16xf32>
    %3 = tpu.transpose %2, [1, 2, 0] : vector<4x2x16xf32> -> vector<2x16x4xf32>
    %4 = vector.shape_cast %3 : vector<2x16x4xf32> to vector<2x64xf32>
    %c0_2 = arith.constant 0 : index
    %c0_3 = arith.constant 0 : index
    %c0_4 = arith.constant 0 : index
    %5 = vector.load %arg3[%c0_2, %c0_3, %c0_4] : memref<1x2x64xf32, #tpu.memory_space<vmem>>, vector<1x2x64xf32>
    %6 = vector.shape_cast %5 : vector<1x2x64xf32> to vector<2x64xf32>
    %7 = vector.shape_cast %4 : vector<2x64xf32> to vector<1x2x64xf32>
    tpu.vector_store %arg3[%c0_2, %c0_3, %c0_4], %7 {strides = array<i32>} : memref<1x2x64xf32, #tpu.memory_space<vmem>>, vector<1x2x64xf32>,
    return
  }
  func.func @transform_0(%arg0: i32, %arg1: i32) -> (i32, i32, i32) {
    %c0_i32 = arith.constant 0 : i32
    %c0_i32_0 = arith.constant 0 : i32
    return %arg0, %c0_i32, %arg1 : i32, i32, i32
  }
  func.func @transform_1(%arg0: i32, %arg1: i32) -> (i32, i32, i32) {
    %c0_i32 = arith.constant 0 : i32
    %c0_i32_0 = arith.constant 0 : i32
    return %arg0, %c0_i32, %arg1 : i32, i32, i32
  }
}

</mosaic_0001>

<llo_original>
// kernel: tpu_custom_call.1
$region0: #{tpu_custom_call.1}
  #allocation0 [shape = 'u32[]', space=smem, size = 0x4, offset = 0x4, fixed_abs, tag = 'smem constant byte address 0x4 - core index']
  #allocation1 [shape = 'u32[144,128]{1,0:T(1,128)}', space=vmem, size = 0x12000, scoped, tag = 'internal scratch']
  %s0 = inlined_call_operand.hbm [shape: f32[2,8,16], index: 0, kind: input, shape index: {}]
  %s1 = inlined_call_operand.hbm [shape: f32[2,2,64], index: 1, kind: output, shape index: {}]
  %s2 = sld [smem:[#allocation0]]
  $region41: #{tpu_custom_call.1} parent=0
    _
  %s4 = ssub.s32 1, %s2
  %s5 = scalar_select 0, %s4, %s2
  $region1: #{tpu_custom_call.1} parent=0
    #allocation2 [shape = 'u8[8192]{0}', space=vmem, size = 0x2000, scoped, tag = 'input window, operand 0']
    #allocation3 [shape = 's32[2]{0}', space=sflag, size = 0x8, scoped, tag = 'scoped memory for tpu_custom_call.1']
    #allocation4 [shape = 's32[2]{0}', space=sflag, size = 0x8, scoped, tag = 'scoped memory for tpu_custom_call.1']
    #allocation5 [shape = 'u8[2048]{0}', space=vmem, size = 0x800, scoped, tag = 'output window, operand 0']
    %6 = vsyncpa [#allocation3], 0
    %s7 = scalar_lea.sflag [#allocation3], 1
    %8 = vsyncpa %s7, 0
    %9 = vsyncpa [#allocation4], 0
    %s10 = scalar_lea.sflag [#allocation4], 1
    %11 = vsyncpa %s10, 0
    loop: start=0, step=1, limit=4
    $region2: #{tpu_custom_call.1} parent=1 // loop_pre_header
      _
    $region3: #{tpu_custom_call.1} parent=1 // loop_header
      %s13 = sphi 0, %s17
      %p14 = scmp.ge.s32.totalorder %s13, 4
      %s20 = sphi 0, %s32
      %s21 = sphi 0, %s28
      %s22 = sphi 0, %s20
      %s23 = sphi 0, %s21
      %s24 = sphi 0, %s22
      %s25 = sphi 0, %s23
      %s37 = sphi 0, %s39
      %s40 = sphi 0, %s37
      %s41 = sphi 0, %s40
      %s57 = sphi 0, %s41
      %s65 = sphi 0, %s67
      %s68 = sphi 0, %s65
      %s69 = sphi 0, %s68
      %s85 = sphi 0, %s69
    $region4: #{tpu_custom_call.1} parent=1 // loop_header_branch
      %16 = sbr.rel (%p14) target = $region8
    $region5: #{tpu_custom_call.1} parent=1 // loop_body
      %s18 = ssub.s32 %s13, 1
      %s19 = ssub.s32 %s13, 2
      %s26 = sadd.s32 1, %s21
      %p27 = scmp.ge.s32.totalorder %s26, 1
      %s28 = scalar_select %p27, 0, %s26
      %s29 = sadd.s32 1, %s20
      %s30 = scalar_select %p27, %s29, %s20
      %p31 = scmp.ge.s32.totalorder %s30, 2
      %s32 = scalar_select %p31, 0, %s30
      %s33 = ssub.s32 %s20, %s32
      %s34 = ssub.s32 %s21, %s28
      %s35 = sor.u32 %s33, %s34
      %p36 = scmp.eq.s32.totalorder %s35, 0
      %s38 = sadd.s32 %s37, 1
      %s39 = scalar_select %p36, %s37, %s38
      %p42 = pneg %p36
      %p43 = scmp.eq.s32.totalorder %s13, 1
      %p44 = por %p42, %p43
      %p45 = scmp.ne.s32.totalorder %s37, %s40
      %p46 = scmp.eq.s32.totalorder %s13, 0
      %p47 = por %p45, %p46
      %p48 = scmp.ne.s32.totalorder %s37, %s40
      %p49 = scmp.eq.s32.totalorder %s18, 1
      %p50 = por %p48, %p49
      %p51 = scmp.ne.s32.totalorder %s40, %s41
      %p52 = scmp.eq.s32.totalorder %s18, 0
      %p53 = por %p51, %p52
      %p54 = scmp.ne.s32.totalorder %s40, %s41
      %p55 = scmp.eq.s32.totalorder %s19, 1
      %p56 = por %p54, %p55
      %p58 = scmp.ne.s32.totalorder %s41, %s57
      %p59 = scmp.eq.s32.totalorder %s19, 0
      %p60 = por %p58, %p59
      %s61 = ssub.s32 %s20, %s32
      %s62 = ssub.s32 %s21, %s28
      %s63 = sor.u32 %s61, %s62
      %p64 = scmp.eq.s32.totalorder %s63, 0
      %s66 = sadd.s32 %s65, 1
      %s67 = scalar_select %p64, %s65, %s66
      %p70 = pneg %p64
      %p71 = scmp.eq.s32.totalorder %s13, 1
      %p72 = por %p70, %p71
      %p73 = scmp.ne.s32.totalorder %s65, %s68
      %p74 = scmp.eq.s32.totalorder %s13, 0
      %p75 = por %p73, %p74
      %p76 = scmp.ne.s32.totalorder %s65, %s68
      %p77 = scmp.eq.s32.totalorder %s18, 1
      %p78 = por %p76, %p77
      %p79 = scmp.ne.s32.totalorder %s68, %s69
      %p80 = scmp.eq.s32.totalorder %s18, 0
      %p81 = por %p79, %p80
      %p82 = scmp.ne.s32.totalorder %s68, %s69
      %p83 = scmp.eq.s32.totalorder %s19, 1
      %p84 = por %p82, %p83
      %p86 = scmp.ne.s32.totalorder %s69, %s85
      %p87 = scmp.eq.s32.totalorder %s19, 0
      %p88 = por %p86, %p87
      %p89 = scmp.le.s32.totalorder 1, %s13
      %p90 = scmp.lt.s32.totalorder %s13, 3
      %p91 = pnand %p89, %p90
      %p92 = pneg %p91
      // Predicated region
      $region9: #{tpu_custom_call.1} parent=5 // pred_check
        _
      $region10: #{tpu_custom_call.1} parent=5 // pred_check_branch
        %94 = sbr.rel (%p91) target = $region12
      $region11: #{tpu_custom_call.1} parent=5 // pred_region
        %s95 = ssub.s32 %s13, 1
      $region12: #{tpu_custom_call.1} parent=5 // pred_fallthru
        _
      %p96 = scmp.lt.s32.totalorder %s13, 2
      // Predicated region
      $region13: #{tpu_custom_call.1} parent=5 // pred_check
        %p97 = pneg %p96
      $region14: #{tpu_custom_call.1} parent=5 // pred_check_branch
        %99 = sbr.rel (%p97) target = $region16
      $region15: #{tpu_custom_call.1} parent=5 // pred_region
        // Predicated region
        $region17: #{tpu_custom_call.1} parent=15 // pred_check
          %p100 = pneg %p47
        $region18: #{tpu_custom_call.1} parent=15 // pred_check_branch
          %102 = sbr.rel (%p100) target = $region20
        $region19: #{tpu_custom_call.1} parent=15 // pred_region
          %s103 = sand.u32 %s37, 1
          %s104 = scalar_lea.sflag [#allocation3], %s103
          %s105 = sand.u32 %s37, 1
          %s106 = smul.addr %s105, 8
          %s107 = scalar_lea.vmem [#allocation2], %s106
          %s109 = ssub.s32 128, 128
          %110 = vsyncadd %s104, %s109
          %s111 = sadd.s32 %s21, %s20
          %s112 = smul.addr %s111, 128
          %s113 = scalar_lea.hbm %s0, %s112
          %s115 = sshll.u32 %s107, 4
          %s116 = int_to_ptr.vmem [resolvable:$true] %s115
          %118 = dma.hbm_to_vmem [thread:$0]  %s113, 128, %s116, %s104
        $region20: #{tpu_custom_call.1} parent=15 // pred_fallthru
          _
      $region16: #{tpu_custom_call.1} parent=5 // pred_fallthru
        _
      %p119 = scmp.le.s32.totalorder 1, %s13
      %p120 = scmp.lt.s32.totalorder %s13, 3
      %p121 = pnand %p119, %p120
      %p122 = pneg %p121
      // Predicated region
      $region21: #{tpu_custom_call.1} parent=5 // pred_check
        _
      $region22: #{tpu_custom_call.1} parent=5 // pred_check_branch
        %124 = sbr.rel (%p121) target = $region24
      $region23: #{tpu_custom_call.1} parent=5 // pred_region
        %s125 = ssub.s32 %s13, 1
        %s126 = sand.u32 %s40, 1
        %s127 = scalar_lea.sflag [#allocation3], %s126
        %s128 = sand.u32 %s40, 1
        %s129 = smul.addr %s128, 8
        %s130 = scalar_lea.vmem [#allocation2], %s129
        // Predicated region
        $region25: #{tpu_custom_call.1} parent=23 // pred_check
          %p131 = pneg %p53
        $region26: #{tpu_custom_call.1} parent=23 // pred_check_branch
          %133 = sbr.rel (%p131) target = $region28
        $region27: #{tpu_custom_call.1} parent=23 // pred_region
          %134 = dma.done %s127, 128
        $region28: #{tpu_custom_call.1} parent=23 // pred_fallthru
          _
        %s135 = sand.u32 %s40, 1
        %s136 = scalar_lea.sflag [#allocation3], %s135
        %s137 = sand.u32 %s40, 1
        %s138 = smul.addr %s137, 8
        %s139 = scalar_lea.vmem [#allocation2], %s138
        %p140 = pneg %p53
        %p141 = pneg %p50
        %p142 = pneg %p81
        %p143 = pneg %p78
        %s144 = sand.u32 %s68, 1
        %s145 = scalar_lea.sflag [#allocation4], %s144
        %s146 = sand.u32 %s68, 1
        %s147 = smul.addr %s146, 2
        %s148 = scalar_lea.vmem [#allocation5], %s147
        %v149 = vld [vmem:[%s130] sm:$0xff]
        %v151 = vcombine.high %v149, %v149
        %v153 = vunpack.c.l.s4 1983009808
        %v154 = vunpack.c.0.s8 %v153
        %v155 = vlaneseq
        %v156 = vshrl.u32 %v155, 7
        %v157 = vsub.s32 %v154, %v156
        %v158 = vrot.slane %v149, %v157
        %v160 = vunpack.c.l.s4 1983009808
        %v161 = vunpack.c.0.s8 %v160
        %v162 = vlaneseq
        %v163 = vshrl.u32 %v162, 7
        %v164 = vsub.s32 %v161, %v163
        %v165 = vrot.slane %v151, %v164
        %v166 = vcombine.high %v158, %v158
        %v167 = vcombine.high %v165, %v165
        %172 = vxpose.xlu0.b32.start [1/16] %v158, 128
        %173 = vxpose.xlu0.b32.cont [2/16] 0.0, 128
        %174 = vxpose.xlu0.b32.cont [3/16] 0.0, 128
        %175 = vxpose.xlu0.b32.cont [4/16] 0.0, 128
        %176 = vxpose.xlu0.b32.cont [5/16] 0.0, 128
        %177 = vxpose.xlu0.b32.cont [6/16] 0.0, 128
        %178 = vxpose.xlu0.b32.cont [7/16] 0.0, 128
        %179 = vxpose.xlu0.b32.cont [8/16] 0.0, 128
        %180 = vxpose.xlu0.b32.cont [9/16] 0.0, 128
        %181 = vxpose.xlu0.b32.cont [10/16] 0.0, 128
        %182 = vxpose.xlu0.b32.cont [11/16] 0.0, 128
        %183 = vxpose.xlu0.b32.cont [12/16] 0.0, 128
        %184 = vxpose.xlu0.b32.cont [13/16] 0.0, 128
        %185 = vxpose.xlu0.b32.cont [14/16] 0.0, 128
        %186 = vxpose.xlu0.b32.cont [15/16] 0.0, 128
        %187 = vxpose.xlu0.b32.end [16/16] 0.0, 128
        %v188 = vpop.trf.xlu0
        %v189 = vpop.trf.xlu0
        %v190 = vpop.trf.xlu0
        %v191 = vpop.trf.xlu0
        %v192 = vpop.trf.xlu0
        %v193 = vpop.trf.xlu0
        %v194 = vpop.trf.xlu0
        %v195 = vpop.trf.xlu0
        %v196 = vpop.trf.xlu0
        %v197 = vpop.trf.xlu0
        %v198 = vpop.trf.xlu0
        %v199 = vpop.trf.xlu0
        %v200 = vpop.trf.xlu0
        %v201 = vpop.trf.xlu0
        %v202 = vpop.trf.xlu0
        %v203 = vpop.trf.xlu0
        %204 = vxpose.xlu0.b32.start [1/16] %v166, 128
        %205 = vxpose.xlu0.b32.cont [2/16] 0.0, 128
        %206 = vxpose.xlu0.b32.cont [3/16] 0.0, 128
        %207 = vxpose.xlu0.b32.cont [4/16] 0.0, 128
        %208 = vxpose.xlu0.b32.cont [5/16] 0.0, 128
        %209 = vxpose.xlu0.b32.cont [6/16] 0.0, 128
        %210 = vxpose.xlu0.b32.cont [7/16] 0.0, 128
        %211 = vxpose.xlu0.b32.cont [8/16] 0.0, 128
        %212 = vxpose.xlu0.b32.cont [9/16] 0.0, 128
        %213 = vxpose.xlu0.b32.cont [10/16] 0.0, 128
        %214 = vxpose.xlu0.b32.cont [11/16] 0.0, 128
        %215 = vxpose.xlu0.b32.cont [12/16] 0.0, 128
        %216 = vxpose.xlu0.b32.cont [13/16] 0.0, 128
        %217 = vxpose.xlu0.b32.cont [14/16] 0.0, 128
        %218 = vxpose.xlu0.b32.cont [15/16] 0.0, 128
        %219 = vxpose.xlu0.b32.end [16/16] 0.0, 128
        %v220 = vpop.trf.xlu0
        %v221 = vpop.trf.xlu0
        %v222 = vpop.trf.xlu0
        %v223 = vpop.trf.xlu0
        %v224 = vpop.trf.xlu0
        %v225 = vpop.trf.xlu0
        %v226 = vpop.trf.xlu0
        %v227 = vpop.trf.xlu0
        %v228 = vpop.trf.xlu0
        %v229 = vpop.trf.xlu0
        %v230 = vpop.trf.xlu0
        %v231 = vpop.trf.xlu0
        %v232 = vpop.trf.xlu0
        %v233 = vpop.trf.xlu0
        %v234 = vpop.trf.xlu0
        %v235 = vpop.trf.xlu0
        %236 = vxpose.xlu0.b32.start [1/16] %v165, 128
        %237 = vxpose.xlu0.b32.cont [2/16] 0.0, 128
        %238 = vxpose.xlu0.b32.cont [3/16] 0.0, 128
        %239 = vxpose.xlu0.b32.cont [4/16] 0.0, 128
        %240 = vxpose.xlu0.b32.cont [5/16] 0.0, 128
        %241 = vxpose.xlu0.b32.cont [6/16] 0.0, 128
        %242 = vxpose.xlu0.b32.cont [7/16] 0.0, 128
        %243 = vxpose.xlu0.b32.cont [8/16] 0.0, 128
        %244 = vxpose.xlu0.b32.cont [9/16] 0.0, 128
        %245 = vxpose.xlu0.b32.cont [10/16] 0.0, 128
        %246 = vxpose.xlu0.b32.cont [11/16] 0.0, 128
        %247 = vxpose.xlu0.b32.cont [12/16] 0.0, 128
        %248 = vxpose.xlu0.b32.cont [13/16] 0.0, 128
        %249 = vxpose.xlu0.b32.cont [14/16] 0.0, 128
        %250 = vxpose.xlu0.b32.cont [15/16] 0.0, 128
        %251 = vxpose.xlu0.b32.end [16/16] 0.0, 128
        %v252 = vpop.trf.xlu0
        %v253 = vpop.trf.xlu0
        %v254 = vpop.trf.xlu0
        %v255 = vpop.trf.xlu0
        %v256 = vpop.trf.xlu0
        %v257 = vpop.trf.xlu0
        %v258 = vpop.trf.xlu0
        %v259 = vpop.trf.xlu0
        %v260 = vpop.trf.xlu0
        %v261 = vpop.trf.xlu0
        %v262 = vpop.trf.xlu0
        %v263 = vpop.trf.xlu0
        %v264 = vpop.trf.xlu0
        %v265 = vpop.trf.xlu0
        %v266 = vpop.trf.xlu0
        %v267 = vpop.trf.xlu0
        %268 = vxpose.xlu0.b32.start [1/16] %v167, 128
        %269 = vxpose.xlu0.b32.cont [2/16] 0.0, 128
        %270 = vxpose.xlu0.b32.cont [3/16] 0.0, 128
        %271 = vxpose.xlu0.b32.cont [4/16] 0.0, 128
        %272 = vxpose.xlu0.b32.cont [5/16] 0.0, 128
        %273 = vxpose.xlu0.b32.cont [6/16] 0.0, 128
        %274 = vxpose.xlu0.b32.cont [7/16] 0.0, 128
        %275 = vxpose.xlu0.b32.cont [8/16] 0.0, 128
        %276 = vxpose.xlu0.b32.cont [9/16] 0.0, 128
        %277 = vxpose.xlu0.b32.cont [10/16] 0.0, 128
        %278 = vxpose.xlu0.b32.cont [11/16] 0.0, 128
        %279 = vxpose.xlu0.b32.cont [12/16] 0.0, 128
        %280 = vxpose.xlu0.b32.cont [13/16] 0.0, 128
        %281 = vxpose.xlu0.b32.cont [14/16] 0.0, 128
        %282 = vxpose.xlu0.b32.cont [15/16] 0.0, 128
        %283 = vxpose.xlu0.b32.end [16/16] 0.0, 128
        %v284 = vpop.trf.xlu0
        %v285 = vpop.trf.xlu0
        %v286 = vpop.trf.xlu0
        %v287 = vpop.trf.xlu0
        %v288 = vpop.trf.xlu0
        %v289 = vpop.trf.xlu0
        %v290 = vpop.trf.xlu0
        %v291 = vpop.trf.xlu0
        %v292 = vpop.trf.xlu0
        %v293 = vpop.trf.xlu0
        %v294 = vpop.trf.xlu0
        %v295 = vpop.trf.xlu0
        %v296 = vpop.trf.xlu0
        %v297 = vpop.trf.xlu0
        %v298 = vpop.trf.xlu0
        %v299 = vpop.trf.xlu0
        %v300 = vcombine.low %v188, %v252
        %v301 = vcombine.high %v188, %v252
        %v303 = vunpack.c.l.s4 1983009808
        %v304 = vunpack.c.0.s8 %v303
        %v305 = vlaneseq
        %v306 = vshrl.u32 %v305, 7
        %v307 = vsub.s32 %v304, %v306
        %v308 = vrot.slane %v300, %v307
        %v310 = vunpack.c.l.s4 1983009808
        %v311 = vunpack.c.0.s8 %v310
        %v312 = vlaneseq
        %v313 = vshrl.u32 %v312, 7
        %v314 = vsub.s32 %v311, %v313
        %v315 = vrot.slane %v301, %v314
        %v316 = vcombine.low %v220, %v284
        %v317 = vcombine.high %v220, %v284
        %v319 = vunpack.c.l.s4 1983009808
        %v320 = vunpack.c.0.s8 %v319
        %v321 = vlaneseq
        %v322 = vshrl.u32 %v321, 7
        %v323 = vsub.s32 %v320, %v322
        %v324 = vrot.slane %v316, %v323
        %v326 = vunpack.c.l.s4 1983009808
        %v327 = vunpack.c.0.s8 %v326
        %v328 = vlaneseq
        %v329 = vshrl.u32 %v328, 7
        %v330 = vsub.s32 %v327, %v329
        %v331 = vrot.slane %v317, %v330
        %v332 = vcombine.low %v308, %v324
        %v333 = vcombine.high %v308, %v324
        %v335 = vunpack.c.l.s4 1934713408
        %v336 = vunpack.c.0.s8 %v335
        %v337 = vlaneseq
        %v338 = vshrl.u32 %v337, 7
        %v339 = vsub.s32 %v336, %v338
        %v340 = vrot.slane %v332, %v339
        %v342 = vunpack.c.l.s4 1934713408
        %v343 = vunpack.c.0.s8 %v342
        %v344 = vlaneseq
        %v345 = vshrl.u32 %v344, 7
        %v346 = vsub.s32 %v343, %v345
        %v347 = vrot.slane %v333, %v346
        %v348 = vcombine.low %v315, %v331
        %v349 = vcombine.high %v315, %v331
        %v351 = vunpack.c.l.s4 1934713408
        %v352 = vunpack.c.0.s8 %v351
        %v353 = vlaneseq
        %v354 = vshrl.u32 %v353, 7
        %v355 = vsub.s32 %v352, %v354
        %v356 = vrot.slane %v348, %v355
        %v358 = vunpack.c.l.s4 1934713408
        %v359 = vunpack.c.0.s8 %v358
        %v360 = vlaneseq
        %v361 = vshrl.u32 %v360, 7
        %v362 = vsub.s32 %v359, %v361
        %v363 = vrot.slane %v349, %v362
        %v364 = vcombine.high %v340, 0.0
        %v365 = vcombine.high %v347, 0.0
        %v366 = vcombine.high %v356, 0.0
        %v367 = vcombine.high %v363, 0.0
        %v368 = vcombine.low %v189, %v253
        %v369 = vcombine.high %v189, %v253
        %v371 = vunpack.c.l.s4 1983009808
        %v372 = vunpack.c.0.s8 %v371
        %v373 = vlaneseq
        %v374 = vshrl.u32 %v373, 7
        %v375 = vsub.s32 %v372, %v374
        %v376 = vrot.slane %v368, %v375
        %v378 = vunpack.c.l.s4 1983009808
        %v379 = vunpack.c.0.s8 %v378
        %v380 = vlaneseq
        %v381 = vshrl.u32 %v380, 7
        %v382 = vsub.s32 %v379, %v381
        %v383 = vrot.slane %v369, %v382
        %v384 = vcombine.low %v221, %v285
        %v385 = vcombine.high %v221, %v285
        %v387 = vunpack.c.l.s4 1983009808
        %v388 = vunpack.c.0.s8 %v387
        %v389 = vlaneseq
        %v390 = vshrl.u32 %v389, 7
        %v391 = vsub.s32 %v388, %v390
        %v392 = vrot.slane %v384, %v391
        %v394 = vunpack.c.l.s4 1983009808
        %v395 = vunpack.c.0.s8 %v394
        %v396 = vlaneseq
        %v397 = vshrl.u32 %v396, 7
        %v398 = vsub.s32 %v395, %v397
        %v399 = vrot.slane %v385, %v398
        %v400 = vcombine.low %v376, %v392
        %v401 = vcombine.high %v376, %v392
        %v403 = vunpack.c.l.s4 1934713408
        %v404 = vunpack.c.0.s8 %v403
        %v405 = vlaneseq
        %v406 = vshrl.u32 %v405, 7
        %v407 = vsub.s32 %v404, %v406
        %v408 = vrot.slane %v400, %v407
        %v410 = vunpack.c.l.s4 1934713408
        %v411 = vunpack.c.0.s8 %v410
        %v412 = vlaneseq
        %v413 = vshrl.u32 %v412, 7
        %v414 = vsub.s32 %v411, %v413
        %v415 = vrot.slane %v401, %v414
        %v416 = vcombine.low %v383, %v399
        %v417 = vcombine.high %v383, %v399
        %v419 = vunpack.c.l.s4 1934713408
        %v420 = vunpack.c.0.s8 %v419
        %v421 = vlaneseq
        %v422 = vshrl.u32 %v421, 7
        %v423 = vsub.s32 %v420, %v422
        %v424 = vrot.slane %v416, %v423
        %v426 = vunpack.c.l.s4 1934713408
        %v427 = vunpack.c.0.s8 %v426
        %v428 = vlaneseq
        %v429 = vshrl.u32 %v428, 7
        %v430 = vsub.s32 %v427, %v429
        %v431 = vrot.slane %v417, %v430
        %v432 = vcombine.high %v408, 0.0
        %v433 = vcombine.high %v415, 0.0
        %v434 = vcombine.high %v424, 0.0
        %v435 = vcombine.high %v431, 0.0
        %436 = vxpose.xlu0.b32.start [1/16] %v340, 128
        %437 = vxpose.xlu0.b32.cont [2/16] 0.0, 128
        %438 = vxpose.xlu0.b32.cont [3/16] 0.0, 128
        %439 = vxpose.xlu0.b32.cont [4/16] 0.0, 128
        %440 = vxpose.xlu0.b32.cont [5/16] 0.0, 128
        %441 = vxpose.xlu0.b32.cont [6/16] 0.0, 128
        %442 = vxpose.xlu0.b32.cont [7/16] 0.0, 128
        %443 = vxpose.xlu0.b32.cont [8/16] 0.0, 128
        %444 = vxpose.xlu0.b32.cont [9/16] 0.0, 128
        %445 = vxpose.xlu0.b32.cont [10/16] 0.0, 128
        %446 = vxpose.xlu0.b32.cont [11/16] 0.0, 128
        %447 = vxpose.xlu0.b32.cont [12/16] 0.0, 128
        %448 = vxpose.xlu0.b32.cont [13/16] 0.0, 128
        %449 = vxpose.xlu0.b32.cont [14/16] 0.0, 128
        %450 = vxpose.xlu0.b32.cont [15/16] 0.0, 128
        %451 = vxpose.xlu0.b32.end [16/16] 0.0, 128
        %v452 = vpop.trf.xlu0
        %v453 = vpop.trf.xlu0
        %v454 = vpop.trf.xlu0
        %v455 = vpop.trf.xlu0
        %v456 = vpop.trf.xlu0
        %v457 = vpop.trf.xlu0
        %v458 = vpop.trf.xlu0
        %v459 = vpop.trf.xlu0
        %v460 = vpop.trf.xlu0
        %v461 = vpop.trf.xlu0
        %v462 = vpop.trf.xlu0
        %v463 = vpop.trf.xlu0
        %v464 = vpop.trf.xlu0
        %v465 = vpop.trf.xlu0
        %v466 = vpop.trf.xlu0
        %v467 = vpop.trf.xlu0
        %468 = vxpose.xlu0.b32.start [1/16] %v364, 128
        %469 = vxpose.xlu0.b32.cont [2/16] 0.0, 128
        %470 = vxpose.xlu0.b32.cont [3/16] 0.0, 128
        %471 = vxpose.xlu0.b32.cont [4/16] 0.0, 128
        %472 = vxpose.xlu0.b32.cont [5/16] 0.0, 128
        %473 = vxpose.xlu0.b32.cont [6/16] 0.0, 128
        %474 = vxpose.xlu0.b32.cont [7/16] 0.0, 128
        %475 = vxpose.xlu0.b32.cont [8/16] 0.0, 128
        %476 = vxpose.xlu0.b32.cont [9/16] 0.0, 128
        %477 = vxpose.xlu0.b32.cont [10/16] 0.0, 128
        %478 = vxpose.xlu0.b32.cont [11/16] 0.0, 128
        %479 = vxpose.xlu0.b32.cont [12/16] 0.0, 128
        %480 = vxpose.xlu0.b32.cont [13/16] 0.0, 128
        %481 = vxpose.xlu0.b32.cont [14/16] 0.0, 128
        %482 = vxpose.xlu0.b32.cont [15/16] 0.0, 128
        %483 = vxpose.xlu0.b32.end [16/16] 0.0, 128
        %v484 = vpop.trf.xlu0
        %v485 = vpop.trf.xlu0
        %v486 = vpop.trf.xlu0
        %v487 = vpop.trf.xlu0
        %v488 = vpop.trf.xlu0
        %v489 = vpop.trf.xlu0
        %v490 = vpop.trf.xlu0
        %v491 = vpop.trf.xlu0
        %v492 = vpop.trf.xlu0
        %v493 = vpop.trf.xlu0
        %v494 = vpop.trf.xlu0
        %v495 = vpop.trf.xlu0
        %v496 = vpop.trf.xlu0
        %v497 = vpop.trf.xlu0
        %v498 = vpop.trf.xlu0
        %v499 = vpop.trf.xlu0
        %500 = vxpose.xlu0.b32.start [1/16] %v347, 128
        %501 = vxpose.xlu0.b32.cont [2/16] 0.0, 128
        %502 = vxpose.xlu0.b32.cont [3/16] 0.0, 128
        %503 = vxpose.xlu0.b32.cont [4/16] 0.0, 128
        %504 = vxpose.xlu0.b32.cont [5/16] 0.0, 128
        %505 = vxpose.xlu0.b32.cont [6/16] 0.0, 128
        %506 = vxpose.xlu0.b32.cont [7/16] 0.0, 128
        %507 = vxpose.xlu0.b32.cont [8/16] 0.0, 128
        %508 = vxpose.xlu0.b32.cont [9/16] 0.0, 128
        %509 = vxpose.xlu0.b32.cont [10/16] 0.0, 128
        %510 = vxpose.xlu0.b32.cont [11/16] 0.0, 128
        %511 = vxpose.xlu0.b32.cont [12/16] 0.0, 128
        %512 = vxpose.xlu0.b32.cont [13/16] 0.0, 128
        %513 = vxpose.xlu0.b32.cont [14/16] 0.0, 128
        %514 = vxpose.xlu0.b32.cont [15/16] 0.0, 128
        %515 = vxpose.xlu0.b32.end [16/16] 0.0, 128
        %v516 = vpop.trf.xlu0
        %v517 = vpop.trf.xlu0
        %v518 = vpop.trf.xlu0
        %v519 = vpop.trf.xlu0
        %v520 = vpop.trf.xlu0
        %v521 = vpop.trf.xlu0
        %v522 = vpop.trf.xlu0
        %v523 = vpop.trf.xlu0
        %v524 = vpop.trf.xlu0
        %v525 = vpop.trf.xlu0
        %v526 = vpop.trf.xlu0
        %v527 = vpop.trf.xlu0
        %v528 = vpop.trf.xlu0
        %v529 = vpop.trf.xlu0
        %v530 = vpop.trf.xlu0
        %v531 = vpop.trf.xlu0
        %532 = vxpose.xlu0.b32.start [1/16] %v365, 128
        %533 = vxpose.xlu0.b32.cont [2/16] 0.0, 128
        %534 = vxpose.xlu0.b32.cont [3/16] 0.0, 128
        %535 = vxpose.xlu0.b32.cont [4/16] 0.0, 128
        %536 = vxpose.xlu0.b32.cont [5/16] 0.0, 128
        %537 = vxpose.xlu0.b32.cont [6/16] 0.0, 128
        %538 = vxpose.xlu0.b32.cont [7/16] 0.0, 128
        %539 = vxpose.xlu0.b32.cont [8/16] 0.0, 128
        %540 = vxpose.xlu0.b32.cont [9/16] 0.0, 128
        %541 = vxpose.xlu0.b32.cont [10/16] 0.0, 128
        %542 = vxpose.xlu0.b32.cont [11/16] 0.0, 128
        %543 = vxpose.xlu0.b32.cont [12/16] 0.0, 128
        %544 = vxpose.xlu0.b32.cont [13/16] 0.0, 128
        %545 = vxpose.xlu0.b32.cont [14/16] 0.0, 128
        %546 = vxpose.xlu0.b32.cont [15/16] 0.0, 128
        %547 = vxpose.xlu0.b32.end [16/16] 0.0, 128
        %v548 = vpop.trf.xlu0
        %v549 = vpop.trf.xlu0
        %v550 = vpop.trf.xlu0
        %v551 = vpop.trf.xlu0
        %v552 = vpop.trf.xlu0
        %v553 = vpop.trf.xlu0
        %v554 = vpop.trf.xlu0
        %v555 = vpop.trf.xlu0
        %v556 = vpop.trf.xlu0
        %v557 = vpop.trf.xlu0
        %v558 = vpop.trf.xlu0
        %v559 = vpop.trf.xlu0
        %v560 = vpop.trf.xlu0
        %v561 = vpop.trf.xlu0
        %v562 = vpop.trf.xlu0
        %v563 = vpop.trf.xlu0
        %564 = vxpose.xlu0.b32.start [1/16] %v356, 128
        %565 = vxpose.xlu0.b32.cont [2/16] 0.0, 128
        %566 = vxpose.xlu0.b32.cont [3/16] 0.0, 128
        %567 = vxpose.xlu0.b32.cont [4/16] 0.0, 128
        %568 = vxpose.xlu0.b32.cont [5/16] 0.0, 128
        %569 = vxpose.xlu0.b32.cont [6/16] 0.0, 128
        %570 = vxpose.xlu0.b32.cont [7/16] 0.0, 128
        %571 = vxpose.xlu0.b32.cont [8/16] 0.0, 128
        %572 = vxpose.xlu0.b32.cont [9/16] 0.0, 128
        %573 = vxpose.xlu0.b32.cont [10/16] 0.0, 128
        %574 = vxpose.xlu0.b32.cont [11/16] 0.0, 128
        %575 = vxpose.xlu0.b32.cont [12/16] 0.0, 128
        %576 = vxpose.xlu0.b32.cont [13/16] 0.0, 128
        %577 = vxpose.xlu0.b32.cont [14/16] 0.0, 128
        %578 = vxpose.xlu0.b32.cont [15/16] 0.0, 128
        %579 = vxpose.xlu0.b32.end [16/16] 0.0, 128
        %v580 = vpop.trf.xlu0
        %v581 = vpop.trf.xlu0
        %v582 = vpop.trf.xlu0
        %v583 = vpop.trf.xlu0
        %v584 = vpop.trf.xlu0
        %v585 = vpop.trf.xlu0
        %v586 = vpop.trf.xlu0
        %v587 = vpop.trf.xlu0
        %v588 = vpop.trf.xlu0
        %v589 = vpop.trf.xlu0
        %v590 = vpop.trf.xlu0
        %v591 = vpop.trf.xlu0
        %v592 = vpop.trf.xlu0
        %v593 = vpop.trf.xlu0
        %v594 = vpop.trf.xlu0
        %v595 = vpop.trf.xlu0
        %596 = vxpose.xlu0.b32.start [1/16] %v366, 128
        %597 = vxpose.xlu0.b32.cont [2/16] 0.0, 128
        %598 = vxpose.xlu0.b32.cont [3/16] 0.0, 128
        %599 = vxpose.xlu0.b32.cont [4/16] 0.0, 128
        %600 = vxpose.xlu0.b32.cont [5/16] 0.0, 128
        %601 = vxpose.xlu0.b32.cont [6/16] 0.0, 128
        %602 = vxpose.xlu0.b32.cont [7/16] 0.0, 128
        %603 = vxpose.xlu0.b32.cont [8/16] 0.0, 128
        %604 = vxpose.xlu0.b32.cont [9/16] 0.0, 128
        %605 = vxpose.xlu0.b32.cont [10/16] 0.0, 128
        %606 = vxpose.xlu0.b32.cont [11/16] 0.0, 128
        %607 = vxpose.xlu0.b32.cont [12/16] 0.0, 128
        %608 = vxpose.xlu0.b32.cont [13/16] 0.0, 128
        %609 = vxpose.xlu0.b32.cont [14/16] 0.0, 128
        %610 = vxpose.xlu0.b32.cont [15/16] 0.0, 128
        %611 = vxpose.xlu0.b32.end [16/16] 0.0, 128
        %v612 = vpop.trf.xlu0
        %v613 = vpop.trf.xlu0
        %v614 = vpop.trf.xlu0
        %v615 = vpop.trf.xlu0
        %v616 = vpop.trf.xlu0
        %v617 = vpop.trf.xlu0
        %v618 = vpop.trf.xlu0
        %v619 = vpop.trf.xlu0
        %v620 = vpop.trf.xlu0
        %v621 = vpop.trf.xlu0
        %v622 = vpop.trf.xlu0
        %v623 = vpop.trf.xlu0
        %v624 = vpop.trf.xlu0
        %v625 = vpop.trf.xlu0
        %v626 = vpop.trf.xlu0
        %v627 = vpop.trf.xlu0
        %628 = vxpose.xlu0.b32.start [1/16] %v363, 128
        %629 = vxpose.xlu0.b32.cont [2/16] 0.0, 128
        %630 = vxpose.xlu0.b32.cont [3/16] 0.0, 128
        %631 = vxpose.xlu0.b32.cont [4/16] 0.0, 128
        %632 = vxpose.xlu0.b32.cont [5/16] 0.0, 128
        %633 = vxpose.xlu0.b32.cont [6/16] 0.0, 128
        %634 = vxpose.xlu0.b32.cont [7/16] 0.0, 128
        %635 = vxpose.xlu0.b32.cont [8/16] 0.0, 128
        %636 = vxpose.xlu0.b32.cont [9/16] 0.0, 128
        %637 = vxpose.xlu0.b32.cont [10/16] 0.0, 128
        %638 = vxpose.xlu0.b32.cont [11/16] 0.0, 128
        %639 = vxpose.xlu0.b32.cont [12/16] 0.0, 128
        %640 = vxpose.xlu0.b32.cont [13/16] 0.0, 128
        %641 = vxpose.xlu0.b32.cont [14/16] 0.0, 128
        %642 = vxpose.xlu0.b32.cont [15/16] 0.0, 128
        %643 = vxpose.xlu0.b32.end [16/16] 0.0, 128
        %v644 = vpop.trf.xlu0
        %v645 = vpop.trf.xlu0
        %v646 = vpop.trf.xlu0
        %v647 = vpop.trf.xlu0
        %v648 = vpop.trf.xlu0
        %v649 = vpop.trf.xlu0
        %v650 = vpop.trf.xlu0
        %v651 = vpop.trf.xlu0
        %v652 = vpop.trf.xlu0
        %v653 = vpop.trf.xlu0
        %v654 = vpop.trf.xlu0
        %v655 = vpop.trf.xlu0
        %v656 = vpop.trf.xlu0
        %v657 = vpop.trf.xlu0
        %v658 = vpop.trf.xlu0
        %v659 = vpop.trf.xlu0
        %660 = vxpose.xlu0.b32.start [1/16] %v367, 128
        %661 = vxpose.xlu0.b32.cont [2/16] 0.0, 128
        %662 = vxpose.xlu0.b32.cont [3/16] 0.0, 128
        %663 = vxpose.xlu0.b32.cont [4/16] 0.0, 128
        %664 = vxpose.xlu0.b32.cont [5/16] 0.0, 128
        %665 = vxpose.xlu0.b32.cont [6/16] 0.0, 128
        %666 = vxpose.xlu0.b32.cont [7/16] 0.0, 128
        %667 = vxpose.xlu0.b32.cont [8/16] 0.0, 128
        %668 = vxpose.xlu0.b32.cont [9/16] 0.0, 128
        %669 = vxpose.xlu0.b32.cont [10/16] 0.0, 128
        %670 = vxpose.xlu0.b32.cont [11/16] 0.0, 128
        %671 = vxpose.xlu0.b32.cont [12/16] 0.0, 128
        %672 = vxpose.xlu0.b32.cont [13/16] 0.0, 128
        %673 = vxpose.xlu0.b32.cont [14/16] 0.0, 128
        %674 = vxpose.xlu0.b32.cont [15/16] 0.0, 128
        %675 = vxpose.xlu0.b32.end [16/16] 0.0, 128
        %v676 = vpop.trf.xlu0
        %v677 = vpop.trf.xlu0
        %v678 = vpop.trf.xlu0
        %v679 = vpop.trf.xlu0
        %v680 = vpop.trf.xlu0
        %v681 = vpop.trf.xlu0
        %v682 = vpop.trf.xlu0
        %v683 = vpop.trf.xlu0
        %v684 = vpop.trf.xlu0
        %v685 = vpop.trf.xlu0
        %v686 = vpop.trf.xlu0
        %v687 = vpop.trf.xlu0
        %v688 = vpop.trf.xlu0
        %v689 = vpop.trf.xlu0
        %v690 = vpop.trf.xlu0
        %v691 = vpop.trf.xlu0
        %692 = vxpose.xlu0.b32.start [1/16] %v408, 128
        %693 = vxpose.xlu0.b32.cont [2/16] 0.0, 128
        %694 = vxpose.xlu0.b32.cont [3/16] 0.0, 128
        %695 = vxpose.xlu0.b32.cont [4/16] 0.0, 128
        %696 = vxpose.xlu0.b32.cont [5/16] 0.0, 128
        %697 = vxpose.xlu0.b32.cont [6/16] 0.0, 128
        %698 = vxpose.xlu0.b32.cont [7/16] 0.0, 128
        %699 = vxpose.xlu0.b32.cont [8/16] 0.0, 128
        %700 = vxpose.xlu0.b32.cont [9/16] 0.0, 128
        %701 = vxpose.xlu0.b32.cont [10/16] 0.0, 128
        %702 = vxpose.xlu0.b32.cont [11/16] 0.0, 128
        %703 = vxpose.xlu0.b32.cont [12/16] 0.0, 128
        %704 = vxpose.xlu0.b32.cont [13/16] 0.0, 128
        %705 = vxpose.xlu0.b32.cont [14/16] 0.0, 128
        %706 = vxpose.xlu0.b32.cont [15/16] 0.0, 128
        %707 = vxpose.xlu0.b32.end [16/16] 0.0, 128
        %v708 = vpop.trf.xlu0
        %v709 = vpop.trf.xlu0
        %v710 = vpop.trf.xlu0
        %v711 = vpop.trf.xlu0
        %v712 = vpop.trf.xlu0
        %v713 = vpop.trf.xlu0
        %v714 = vpop.trf.xlu0
        %v715 = vpop.trf.xlu0
        %v716 = vpop.trf.xlu0
        %v717 = vpop.trf.xlu0
        %v718 = vpop.trf.xlu0
        %v719 = vpop.trf.xlu0
        %v720 = vpop.trf.xlu0
        %v721 = vpop.trf.xlu0
        %v722 = vpop.trf.xlu0
        %v723 = vpop.trf.xlu0
        %724 = vxpose.xlu0.b32.start [1/16] %v432, 128
        %725 = vxpose.xlu0.b32.cont [2/16] 0.0, 128
        %726 = vxpose.xlu0.b32.cont [3/16] 0.0, 128
        %727 = vxpose.xlu0.b32.cont [4/16] 0.0, 128
        %728 = vxpose.xlu0.b32.cont [5/16] 0.0, 128
        %729 = vxpose.xlu0.b32.cont [6/16] 0.0, 128
        %730 = vxpose.xlu0.b32.cont [7/16] 0.0, 128
        %731 = vxpose.xlu0.b32.cont [8/16] 0.0, 128
        %732 = vxpose.xlu0.b32.cont [9/16] 0.0, 128
        %733 = vxpose.xlu0.b32.cont [10/16] 0.0, 128
        %734 = vxpose.xlu0.b32.cont [11/16] 0.0, 128
        %735 = vxpose.xlu0.b32.cont [12/16] 0.0, 128
        %736 = vxpose.xlu0.b32.cont [13/16] 0.0, 128
        %737 = vxpose.xlu0.b32.cont [14/16] 0.0, 128
        %738 = vxpose.xlu0.b32.cont [15/16] 0.0, 128
        %739 = vxpose.xlu0.b32.end [16/16] 0.0, 128
        %v740 = vpop.trf.xlu0
        %v741 = vpop.trf.xlu0
        %v742 = vpop.trf.xlu0
        %v743 = vpop.trf.xlu0
        %v744 = vpop.trf.xlu0
        %v745 = vpop.trf.xlu0
        %v746 = vpop.trf.xlu0
        %v747 = vpop.trf.xlu0
        %v748 = vpop.trf.xlu0
        %v749 = vpop.trf.xlu0
        %v750 = vpop.trf.xlu0
        %v751 = vpop.trf.xlu0
        %v752 = vpop.trf.xlu0
        %v753 = vpop.trf.xlu0
        %v754 = vpop.trf.xlu0
        %v755 = vpop.trf.xlu0
        %756 = vxpose.xlu0.b32.start [1/16] %v415, 128
        %757 = vxpose.xlu0.b32.cont [2/16] 0.0, 128
        %758 = vxpose.xlu0.b32.cont [3/16] 0.0, 128
        %759 = vxpose.xlu0.b32.cont [4/16] 0.0, 128
        %760 = vxpose.xlu0.b32.cont [5/16] 0.0, 128
        %761 = vxpose.xlu0.b32.cont [6/16] 0.0, 128
        %762 = vxpose.xlu0.b32.cont [7/16] 0.0, 128
        %763 = vxpose.xlu0.b32.cont [8/16] 0.0, 128
        %764 = vxpose.xlu0.b32.cont [9/16] 0.0, 128
        %765 = vxpose.xlu0.b32.cont [10/16] 0.0, 128
        %766 = vxpose.xlu0.b32.cont [11/16] 0.0, 128
        %767 = vxpose.xlu0.b32.cont [12/16] 0.0, 128
        %768 = vxpose.xlu0.b32.cont [13/16] 0.0, 128
        %769 = vxpose.xlu0.b32.cont [14/16] 0.0, 128
        %770 = vxpose.xlu0.b32.cont [15/16] 0.0, 128
        %771 = vxpose.xlu0.b32.end [16/16] 0.0, 128
        %v772 = vpop.trf.xlu0
        %v773 = vpop.trf.xlu0
        %v774 = vpop.trf.xlu0
        %v775 = vpop.trf.xlu0
        %v776 = vpop.trf.xlu0
        %v777 = vpop.trf.xlu0
        %v778 = vpop.trf.xlu0
        %v779 = vpop.trf.xlu0
        %v780 = vpop.trf.xlu0
        %v781 = vpop.trf.xlu0
        %v782 = vpop.trf.xlu0
        %v783 = vpop.trf.xlu0
        %v784 = vpop.trf.xlu0
        %v785 = vpop.trf.xlu0
        %v786 = vpop.trf.xlu0
        %v787 = vpop.trf.xlu0
        %788 = vxpose.xlu0.b32.start [1/16] %v433, 128
        %789 = vxpose.xlu0.b32.cont [2/16] 0.0, 128
        %790 = vxpose.xlu0.b32.cont [3/16] 0.0, 128
        %791 = vxpose.xlu0.b32.cont [4/16] 0.0, 128
        %792 = vxpose.xlu0.b32.cont [5/16] 0.0, 128
        %793 = vxpose.xlu0.b32.cont [6/16] 0.0, 128
        %794 = vxpose.xlu0.b32.cont [7/16] 0.0, 128
        %795 = vxpose.xlu0.b32.cont [8/16] 0.0, 128
        %796 = vxpose.xlu0.b32.cont [9/16] 0.0, 128
        %797 = vxpose.xlu0.b32.cont [10/16] 0.0, 128
        %798 = vxpose.xlu0.b32.cont [11/16] 0.0, 128
        %799 = vxpose.xlu0.b32.cont [12/16] 0.0, 128
        %800 = vxpose.xlu0.b32.cont [13/16] 0.0, 128
        %801 = vxpose.xlu0.b32.cont [14/16] 0.0, 128
        %802 = vxpose.xlu0.b32.cont [15/16] 0.0, 128
        %803 = vxpose.xlu0.b32.end [16/16] 0.0, 128
        %v804 = vpop.trf.xlu0
        %v805 = vpop.trf.xlu0
        %v806 = vpop.trf.xlu0
        %v807 = vpop.trf.xlu0
        %v808 = vpop.trf.xlu0
        %v809 = vpop.trf.xlu0
        %v810 = vpop.trf.xlu0
        %v811 = vpop.trf.xlu0
        %v812 = vpop.trf.xlu0
        %v813 = vpop.trf.xlu0
        %v814 = vpop.trf.xlu0
        %v815 = vpop.trf.xlu0
        %v816 = vpop.trf.xlu0
        %v817 = vpop.trf.xlu0
        %v818 = vpop.trf.xlu0
        %v819 = vpop.trf.xlu0
        %820 = vxpose.xlu0.b32.start [1/16] %v424, 128
        %821 = vxpose.xlu0.b32.cont [2/16] 0.0, 128
        %822 = vxpose.xlu0.b32.cont [3/16] 0.0, 128
        %823 = vxpose.xlu0.b32.cont [4/16] 0.0, 128
        %824 = vxpose.xlu0.b32.cont [5/16] 0.0, 128
        %825 = vxpose.xlu0.b32.cont [6/16] 0.0, 128
        %826 = vxpose.xlu0.b32.cont [7/16] 0.0, 128
        %827 = vxpose.xlu0.b32.cont [8/16] 0.0, 128
        %828 = vxpose.xlu0.b32.cont [9/16] 0.0, 128
        %829 = vxpose.xlu0.b32.cont [10/16] 0.0, 128
        %830 = vxpose.xlu0.b32.cont [11/16] 0.0, 128
        %831 = vxpose.xlu0.b32.cont [12/16] 0.0, 128
        %832 = vxpose.xlu0.b32.cont [13/16] 0.0, 128
        %833 = vxpose.xlu0.b32.cont [14/16] 0.0, 128
        %834 = vxpose.xlu0.b32.cont [15/16] 0.0, 128
        %835 = vxpose.xlu0.b32.end [16/16] 0.0, 128
        %v836 = vpop.trf.xlu0
        %v837 = vpop.trf.xlu0
        %v838 = vpop.trf.xlu0
        %v839 = vpop.trf.xlu0
        %v840 = vpop.trf.xlu0
        %v841 = vpop.trf.xlu0
        %v842 = vpop.trf.xlu0
        %v843 = vpop.trf.xlu0
        %v844 = vpop.trf.xlu0
        %v845 = vpop.trf.xlu0
        %v846 = vpop.trf.xlu0
        %v847 = vpop.trf.xlu0
        %v848 = vpop.trf.xlu0
        %v849 = vpop.trf.xlu0
        %v850 = vpop.trf.xlu0
        %v851 = vpop.trf.xlu0
        %852 = vxpose.xlu0.b32.start [1/16] %v434, 128
        %853 = vxpose.xlu0.b32.cont [2/16] 0.0, 128
        %854 = vxpose.xlu0.b32.cont [3/16] 0.0, 128
        %855 = vxpose.xlu0.b32.cont [4/16] 0.0, 128
        %856 = vxpose.xlu0.b32.cont [5/16] 0.0, 128
        %857 = vxpose.xlu0.b32.cont [6/16] 0.0, 128
        %858 = vxpose.xlu0.b32.cont [7/16] 0.0, 128
        %859 = vxpose.xlu0.b32.cont [8/16] 0.0, 128
        %860 = vxpose.xlu0.b32.cont [9/16] 0.0, 128
        %861 = vxpose.xlu0.b32.cont [10/16] 0.0, 128
        %862 = vxpose.xlu0.b32.cont [11/16] 0.0, 128
        %863 = vxpose.xlu0.b32.cont [12/16] 0.0, 128
        %864 = vxpose.xlu0.b32.cont [13/16] 0.0, 128
        %865 = vxpose.xlu0.b32.cont [14/16] 0.0, 128
        %866 = vxpose.xlu0.b32.cont [15/16] 0.0, 128
        %867 = vxpose.xlu0.b32.end [16/16] 0.0, 128
        %v868 = vpop.trf.xlu0
        %v869 = vpop.trf.xlu0
        %v870 = vpop.trf.xlu0
        %v871 = vpop.trf.xlu0
        %v872 = vpop.trf.xlu0
        %v873 = vpop.trf.xlu0
        %v874 = vpop.trf.xlu0
        %v875 = vpop.trf.xlu0
        %v876 = vpop.trf.xlu0
        %v877 = vpop.trf.xlu0
        %v878 = vpop.trf.xlu0
        %v879 = vpop.trf.xlu0
        %v880 = vpop.trf.xlu0
        %v881 = vpop.trf.xlu0
        %v882 = vpop.trf.xlu0
        %v883 = vpop.trf.xlu0
        %884 = vxpose.xlu0.b32.start [1/16] %v431, 128
        %885 = vxpose.xlu0.b32.cont [2/16] 0.0, 128
        %886 = vxpose.xlu0.b32.cont [3/16] 0.0, 128
        %887 = vxpose.xlu0.b32.cont [4/16] 0.0, 128
        %888 = vxpose.xlu0.b32.cont [5/16] 0.0, 128
        %889 = vxpose.xlu0.b32.cont [6/16] 0.0, 128
        %890 = vxpose.xlu0.b32.cont [7/16] 0.0, 128
        %891 = vxpose.xlu0.b32.cont [8/16] 0.0, 128
        %892 = vxpose.xlu0.b32.cont [9/16] 0.0, 128
        %893 = vxpose.xlu0.b32.cont [10/16] 0.0, 128
        %894 = vxpose.xlu0.b32.cont [11/16] 0.0, 128
        %895 = vxpose.xlu0.b32.cont [12/16] 0.0, 128
        %896 = vxpose.xlu0.b32.cont [13/16] 0.0, 128
        %897 = vxpose.xlu0.b32.cont [14/16] 0.0, 128
        %898 = vxpose.xlu0.b32.cont [15/16] 0.0, 128
        %899 = vxpose.xlu0.b32.end [16/16] 0.0, 128
        %v900 = vpop.trf.xlu0
        %v901 = vpop.trf.xlu0
        %v902 = vpop.trf.xlu0
        %v903 = vpop.trf.xlu0
        %v904 = vpop.trf.xlu0
        %v905 = vpop.trf.xlu0
        %v906 = vpop.trf.xlu0
        %v907 = vpop.trf.xlu0
        %v908 = vpop.trf.xlu0
        %v909 = vpop.trf.xlu0
        %v910 = vpop.trf.xlu0
        %v911 = vpop.trf.xlu0
        %v912 = vpop.trf.xlu0
        %v913 = vpop.trf.xlu0
        %v914 = vpop.trf.xlu0
        %v915 = vpop.trf.xlu0
        %916 = vxpose.xlu0.b32.start [1/16] %v435, 128
        %917 = vxpose.xlu0.b32.cont [2/16] 0.0, 128
        %918 = vxpose.xlu0.b32.cont [3/16] 0.0, 128
        %919 = vxpose.xlu0.b32.cont [4/16] 0.0, 128
        %920 = vxpose.xlu0.b32.cont [5/16] 0.0, 128
        %921 = vxpose.xlu0.b32.cont [6/16] 0.0, 128
        %922 = vxpose.xlu0.b32.cont [7/16] 0.0, 128
        %923 = vxpose.xlu0.b32.cont [8/16] 0.0, 128
        %924 = vxpose.xlu0.b32.cont [9/16] 0.0, 128
        %925 = vxpose.xlu0.b32.cont [10/16] 0.0, 128
        %926 = vxpose.xlu0.b32.cont [11/16] 0.0, 128
        %927 = vxpose.xlu0.b32.cont [12/16] 0.0, 128
        %928 = vxpose.xlu0.b32.cont [13/16] 0.0, 128
        %929 = vxpose.xlu0.b32.cont [14/16] 0.0, 128
        %930 = vxpose.xlu0.b32.cont [15/16] 0.0, 128
        %931 = vxpose.xlu0.b32.end [16/16] 0.0, 128
        %v932 = vpop.trf.xlu0
        %v933 = vpop.trf.xlu0
        %v934 = vpop.trf.xlu0
        %v935 = vpop.trf.xlu0
        %v936 = vpop.trf.xlu0
        %v937 = vpop.trf.xlu0
        %v938 = vpop.trf.xlu0
        %v939 = vpop.trf.xlu0
        %v940 = vpop.trf.xlu0
        %v941 = vpop.trf.xlu0
        %v942 = vpop.trf.xlu0
        %v943 = vpop.trf.xlu0
        %v944 = vpop.trf.xlu0
        %v945 = vpop.trf.xlu0
        %v946 = vpop.trf.xlu0
        %v947 = vpop.trf.xlu0
        %v948 = vcombine.low %v452, %v516
        %v950 = vunpack.c.l.s4 1983009808
        %v951 = vunpack.c.0.s8 %v950
        %v952 = vlaneseq
        %v953 = vshrl.u32 %v952, 7
        %v954 = vsub.s32 %v951, %v953
        %v955 = vrot.slane %v948, %v954
        %v956 = vcombine.low %v484, %v548
        %v958 = vunpack.c.l.s4 1983009808
        %v959 = vunpack.c.0.s8 %v958
        %v960 = vlaneseq
        %v961 = vshrl.u32 %v960, 7
        %v962 = vsub.s32 %v959, %v961
        %v963 = vrot.slane %v956, %v962
        %v964 = vcombine.low %v580, %v644
        %v966 = vunpack.c.l.s4 1983009808
        %v967 = vunpack.c.0.s8 %v966
        %v968 = vlaneseq
        %v969 = vshrl.u32 %v968, 7
        %v970 = vsub.s32 %v967, %v969
        %v971 = vrot.slane %v964, %v970
        %v972 = vcombine.low %v612, %v676
        %v974 = vunpack.c.l.s4 1983009808
        %v975 = vunpack.c.0.s8 %v974
        %v976 = vlaneseq
        %v977 = vshrl.u32 %v976, 7
        %v978 = vsub.s32 %v975, %v977
        %v979 = vrot.slane %v972, %v978
        %v980 = vcombine.low %v955, %v963
        %v982 = vunpack.c.l.s4 1934713408
        %v983 = vunpack.c.0.s8 %v982
        %v984 = vlaneseq
        %v985 = vshrl.u32 %v984, 7
        %v986 = vsub.s32 %v983, %v985
        %v987 = vrot.slane %v980, %v986
        %v988 = vcombine.low %v971, %v979
        %v990 = vunpack.c.l.s4 1934713408
        %v991 = vunpack.c.0.s8 %v990
        %v992 = vlaneseq
        %v993 = vshrl.u32 %v992, 7
        %v994 = vsub.s32 %v991, %v993
        %v995 = vrot.slane %v988, %v994
        %v996 = vcombine.low %v987, %v995
        %v997 = vcombine.high %v987, %v995
        %v998 = vcombine.low %v708, %v772
        %v1000 = vunpack.c.l.s4 1983009808
        %v1001 = vunpack.c.0.s8 %v1000
        %v1002 = vlaneseq
        %v1003 = vshrl.u32 %v1002, 7
        %v1004 = vsub.s32 %v1001, %v1003
        %v1005 = vrot.slane %v998, %v1004
        %v1006 = vcombine.low %v740, %v804
        %v1008 = vunpack.c.l.s4 1983009808
        %v1009 = vunpack.c.0.s8 %v1008
        %v1010 = vlaneseq
        %v1011 = vshrl.u32 %v1010, 7
        %v1012 = vsub.s32 %v1009, %v1011
        %v1013 = vrot.slane %v1006, %v1012
        %v1014 = vcombine.low %v836, %v900
        %v1016 = vunpack.c.l.s4 1983009808
        %v1017 = vunpack.c.0.s8 %v1016
        %v1018 = vlaneseq
        %v1019 = vshrl.u32 %v1018, 7
        %v1020 = vsub.s32 %v1017, %v1019
        %v1021 = vrot.slane %v1014, %v1020
        %v1022 = vcombine.low %v868, %v932
        %v1024 = vunpack.c.l.s4 1983009808
        %v1025 = vunpack.c.0.s8 %v1024
        %v1026 = vlaneseq
        %v1027 = vshrl.u32 %v1026, 7
        %v1028 = vsub.s32 %v1025, %v1027
        %v1029 = vrot.slane %v1022, %v1028
        %v1030 = vcombine.low %v1005, %v1013
        %v1032 = vunpack.c.l.s4 1934713408
        %v1033 = vunpack.c.0.s8 %v1032
        %v1034 = vlaneseq
        %v1035 = vshrl.u32 %v1034, 7
        %v1036 = vsub.s32 %v1033, %v1035
        %v1037 = vrot.slane %v1030, %v1036
        %v1038 = vcombine.low %v1021, %v1029
        %v1040 = vunpack.c.l.s4 1934713408
        %v1041 = vunpack.c.0.s8 %v1040
        %v1042 = vlaneseq
        %v1043 = vshrl.u32 %v1042, 7
        %v1044 = vsub.s32 %v1041, %v1043
        %v1045 = vrot.slane %v1038, %v1044
        %v1046 = vcombine.low %v1037, %v1045
        %v1047 = vcombine.high %v1037, %v1045
        %v1048 = vcombine.high %v996, 0.0
        %v1050 = vunpack.c.l.s4 1983009808
        %v1051 = vunpack.c.0.s8 %v1050
        %v1052 = vlaneseq
        %v1053 = vshrl.u32 %v1052, 7
        %v1054 = vsub.s32 %v1051, %v1053
        %v1055 = vrot.slane %v996, %v1054
        %v1057 = vunpack.c.l.s4 1983009808
        %v1058 = vunpack.c.0.s8 %v1057
        %v1059 = vlaneseq
        %v1060 = vshrl.u32 %v1059, 7
        %v1061 = vsub.s32 %v1058, %v1060
        %v1062 = vrot.slane %v1048, %v1061
        %v1063 = vcombine.high %v997, 0.0
        %v1065 = vunpack.c.l.s4 1983009808
        %v1066 = vunpack.c.0.s8 %v1065
        %v1067 = vlaneseq
        %v1068 = vshrl.u32 %v1067, 7
        %v1069 = vsub.s32 %v1066, %v1068
        %v1070 = vrot.slane %v997, %v1069
        %v1072 = vunpack.c.l.s4 1983009808
        %v1073 = vunpack.c.0.s8 %v1072
        %v1074 = vlaneseq
        %v1075 = vshrl.u32 %v1074, 7
        %v1076 = vsub.s32 %v1073, %v1075
        %v1077 = vrot.slane %v1063, %v1076
        %v1078 = vcombine.low %v1055, %v1070
        %v1079 = vcombine.high %v1055, %v1070
        %v1081 = vunpack.c.l.s4 1934713408
        %v1082 = vunpack.c.0.s8 %v1081
        %v1083 = vlaneseq
        %v1084 = vshrl.u32 %v1083, 7
        %v1085 = vsub.s32 %v1082, %v1084
        %v1086 = vrot.slane %v1078, %v1085
        %v1088 = vunpack.c.l.s4 1934713408
        %v1089 = vunpack.c.0.s8 %v1088
        %v1090 = vlaneseq
        %v1091 = vshrl.u32 %v1090, 7
        %v1092 = vsub.s32 %v1089, %v1091
        %v1093 = vrot.slane %v1079, %v1092
        %v1094 = vcombine.low %v1062, %v1077
        %v1095 = vcombine.high %v1062, %v1077
        %v1097 = vunpack.c.l.s4 1934713408
        %v1098 = vunpack.c.0.s8 %v1097
        %v1099 = vlaneseq
        %v1100 = vshrl.u32 %v1099, 7
        %v1101 = vsub.s32 %v1098, %v1100
        %v1102 = vrot.slane %v1094, %v1101
        %v1104 = vunpack.c.l.s4 1934713408
        %v1105 = vunpack.c.0.s8 %v1104
        %v1106 = vlaneseq
        %v1107 = vshrl.u32 %v1106, 7
        %v1108 = vsub.s32 %v1105, %v1107
        %v1109 = vrot.slane %v1095, %v1108
        %v1110 = vcombine.high %v1086, 0.0
        %v1111 = vcombine.high %v1093, 0.0
        %v1112 = vcombine.high %v1102, 0.0
        %v1113 = vcombine.high %v1109, 0.0
        %v1114 = vcombine.high %v1046, 0.0
        %v1116 = vunpack.c.l.s4 1983009808
        %v1117 = vunpack.c.0.s8 %v1116
        %v1118 = vlaneseq
        %v1119 = vshrl.u32 %v1118, 7
        %v1120 = vsub.s32 %v1117, %v1119
        %v1121 = vrot.slane %v1046, %v1120
        %v1123 = vunpack.c.l.s4 1983009808
        %v1124 = vunpack.c.0.s8 %v1123
        %v1125 = vlaneseq
        %v1126 = vshrl.u32 %v1125, 7
        %v1127 = vsub.s32 %v1124, %v1126
        %v1128 = vrot.slane %v1114, %v1127
        %v1129 = vcombine.high %v1047, 0.0
        %v1131 = vunpack.c.l.s4 1983009808
        %v1132 = vunpack.c.0.s8 %v1131
        %v1133 = vlaneseq
        %v1134 = vshrl.u32 %v1133, 7
        %v1135 = vsub.s32 %v1132, %v1134
        %v1136 = vrot.slane %v1047, %v1135
        %v1138 = vunpack.c.l.s4 1983009808
        %v1139 = vunpack.c.0.s8 %v1138
        %v1140 = vlaneseq
        %v1141 = vshrl.u32 %v1140, 7
        %v1142 = vsub.s32 %v1139, %v1141
        %v1143 = vrot.slane %v1129, %v1142
        %v1144 = vcombine.low %v1121, %v1136
        %v1145 = vcombine.high %v1121, %v1136
        %v1147 = vunpack.c.l.s4 1934713408
        %v1148 = vunpack.c.0.s8 %v1147
        %v1149 = vlaneseq
        %v1150 = vshrl.u32 %v1149, 7
        %v1151 = vsub.s32 %v1148, %v1150
        %v1152 = vrot.slane %v1144, %v1151
        %v1154 = vunpack.c.l.s4 1934713408
        %v1155 = vunpack.c.0.s8 %v1154
        %v1156 = vlaneseq
        %v1157 = vshrl.u32 %v1156, 7
        %v1158 = vsub.s32 %v1155, %v1157
        %v1159 = vrot.slane %v1145, %v1158
        %v1160 = vcombine.low %v1128, %v1143
        %v1161 = vcombine.high %v1128, %v1143
        %v1163 = vunpack.c.l.s4 1934713408
        %v1164 = vunpack.c.0.s8 %v1163
        %v1165 = vlaneseq
        %v1166 = vshrl.u32 %v1165, 7
        %v1167 = vsub.s32 %v1164, %v1166
        %v1168 = vrot.slane %v1160, %v1167
        %v1170 = vunpack.c.l.s4 1934713408
        %v1171 = vunpack.c.0.s8 %v1170
        %v1172 = vlaneseq
        %v1173 = vshrl.u32 %v1172, 7
        %v1174 = vsub.s32 %v1171, %v1173
        %v1175 = vrot.slane %v1161, %v1174
        %v1176 = vcombine.high %v1152, 0.0
        %v1177 = vcombine.high %v1159, 0.0
        %v1178 = vcombine.high %v1168, 0.0
        %v1179 = vcombine.high %v1175, 0.0
        %1181 = vrot.lane.b32.xlu0 %v1110, 4
        %v1182 = vpop.permute.xlu0 %1181
        %1185 = vrot.lane.b32.xlu0 %v1093, 8
        %v1186 = vpop.permute.xlu0 %1185
        %1189 = vrot.lane.b32.xlu0 %v1111, 12
        %v1190 = vpop.permute.xlu0 %1189
        %1193 = vrot.lane.b32.xlu0 %v1102, 16
        %v1194 = vpop.permute.xlu0 %1193
        %1197 = vrot.lane.b32.xlu0 %v1112, 20
        %v1198 = vpop.permute.xlu0 %1197
        %1201 = vrot.lane.b32.xlu0 %v1109, 24
        %v1202 = vpop.permute.xlu0 %1201
        %1205 = vrot.lane.b32.xlu0 %v1113, 28
        %v1206 = vpop.permute.xlu0 %1205
        %1209 = vrot.lane.b32.xlu0 %v1152, 32
        %v1210 = vpop.permute.xlu0 %1209
        %1213 = vrot.lane.b32.xlu0 %v1176, 36
        %v1214 = vpop.permute.xlu0 %1213
        %1217 = vrot.lane.b32.xlu0 %v1159, 40
        %v1218 = vpop.permute.xlu0 %1217
        %1221 = vrot.lane.b32.xlu0 %v1177, 44
        %v1222 = vpop.permute.xlu0 %1221
        %1225 = vrot.lane.b32.xlu0 %v1168, 48
        %v1226 = vpop.permute.xlu0 %1225
        %1229 = vrot.lane.b32.xlu0 %v1178, 52
        %v1230 = vpop.permute.xlu0 %1229
        %1233 = vrot.lane.b32.xlu0 %v1175, 56
        %v1234 = vpop.permute.xlu0 %1233
        %1237 = vrot.lane.b32.xlu0 %v1179, 60
        %v1238 = vpop.permute.xlu0 %1237
        %vm1240 = vcmask 31744
        %v1241 = vsel %vm1240, %v1086, %v1182
        %vm1242 = vcmask 64512
        %v1243 = vsel %vm1242, %v1241, %v1186
        %vm1244 = vcmask 97280
        %v1245 = vsel %vm1244, %v1243, %v1190
        %vm1246 = vcmask 130048
        %v1247 = vsel %vm1246, %v1245, %v1194
        %vm1248 = vcmask 162816
        %v1249 = vsel %vm1248, %v1247, %v1198
        %vm1250 = vcmask 195584
        %v1251 = vsel %vm1250, %v1249, %v1202
        %vm1252 = vcmask 228352
        %v1253 = vsel %vm1252, %v1251, %v1206
        %vm1254 = vcmask 261120
        %v1255 = vsel %vm1254, %v1253, %v1210
        %vm1256 = vcmask 293888
        %v1257 = vsel %vm1256, %v1255, %v1214
        %vm1258 = vcmask 326656
        %v1259 = vsel %vm1258, %v1257, %v1218
        %vm1260 = vcmask 359424
        %v1261 = vsel %vm1260, %v1259, %v1222
        %vm1262 = vcmask 392192
        %v1263 = vsel %vm1262, %v1261, %v1226
        %vm1264 = vcmask 424960
        %v1265 = vsel %vm1264, %v1263, %v1230
        %vm1266 = vcmask 457728
        %v1267 = vsel %vm1266, %v1265, %v1234
        %vm1268 = vcmask 490496
        %v1269 = vsel %vm1268, %v1267, %v1238
        %vm1270 = vcmask 517120
        %1271 = vst.msk [vmem:[%s148] sm:$0x3] %vm1270, %v1269
        %s1272 = sand.u32 %s68, 1
        %s1273 = scalar_lea.sflag [#allocation4], %s1272
        %s1274 = sand.u32 %s68, 1
        %s1275 = smul.addr %s1274, 2
        %s1276 = scalar_lea.vmem [#allocation5], %s1275
        // Predicated region
        $region29: #{tpu_custom_call.1} parent=23 // pred_check
          %p1277 = pneg %p78
        $region30: #{tpu_custom_call.1} parent=23 // pred_check_branch
          %1279 = sbr.rel (%p1277) target = $region32
        $region31: #{tpu_custom_call.1} parent=23 // pred_region
          %s1281 = ssub.s32 32, 32
          %1282 = vsyncadd %s1273, %s1281
          %s1283 = sadd.s32 %s23, %s22
          %s1284 = smul.addr %s1283, 32
          %s1285 = scalar_lea.hbm %s1, %s1284
          %s1287 = sshll.u32 %s1276, 4
          %s1288 = int_to_ptr.vmem [resolvable:$true] %s1287
          %1290 = dma.vmem_to_hbm [thread:$0]  %s1288, 32, %s1285, %s1273
        $region32: #{tpu_custom_call.1} parent=23 // pred_fallthru
          _
      $region24: #{tpu_custom_call.1} parent=5 // pred_fallthru
        _
      %p1291 = scmp.le.s32.totalorder 2, %s13
      // Predicated region
      $region33: #{tpu_custom_call.1} parent=5 // pred_check
        %p1292 = pneg %p1291
      $region34: #{tpu_custom_call.1} parent=5 // pred_check_branch
        %1294 = sbr.rel (%p1292) target = $region36
      $region35: #{tpu_custom_call.1} parent=5 // pred_region
        %s1295 = ssub.s32 %s13, 2
        // Predicated region
        $region37: #{tpu_custom_call.1} parent=35 // pred_check
          %p1296 = pneg %p84
        $region38: #{tpu_custom_call.1} parent=35 // pred_check_branch
          %1298 = sbr.rel (%p1296) target = $region40
        $region39: #{tpu_custom_call.1} parent=35 // pred_region
          %s1299 = sand.u32 %s69, 1
          %s1300 = scalar_lea.sflag [#allocation4], %s1299
          %s1301 = sand.u32 %s69, 1
          %s1302 = smul.addr %s1301, 2
          %s1303 = scalar_lea.vmem [#allocation5], %s1302
          %1304 = dma.done %s1300, 32
        $region40: #{tpu_custom_call.1} parent=35 // pred_fallthru
          _
      $region36: #{tpu_custom_call.1} parent=5 // pred_fallthru
        _
    $region6: #{tpu_custom_call.1} parent=1 // loop_footer
      %s17 = sadd.s32 1, %s13
    $region7: #{tpu_custom_call.1} parent=1 // loop_footer_branch
      %12 = sbr.rel target = $region3
    $region8: #{tpu_custom_call.1} parent=1 // loop_exit
      _
    %1305 = vsyncpa [#allocation3], 1
    %s1306 = scalar_lea.sflag [#allocation3], 1
    %1307 = vsyncpa %s1306, 1
    %1308 = vsyncpa [#allocation4], 1
    %s1309 = scalar_lea.sflag [#allocation4], 1
    %1310 = vsyncpa %s1309, 1

</llo_original>
